<compile_context>
chip_gen: v6e
topology: v6e:2x2x1
jax: 0.10.0
libtpu: 0.0.40
codegen_flags: <defaults>
</compile_context>

<pallas_src>
import functools

import jax
import jax.numpy as jnp
from jax import lax
from jax.experimental import pallas as pl
from jax.experimental.pallas import tpu as pltpu

_LANE = 128
_NEG = -1e30  # finite "-inf" for padded class logits (avoids inf*0 = NaN)


def _round_up(v, m):
    return (v + m - 1) // m * m


def _align_down(v, m):
    return v - v % m


def _nll_kernel(x_ref, w1_ref, b1_ref, w2_ref, b2_ref, tgt_ref, partial_ref,
                *, batch, tb):
    i = pl.program_id(0)

    # fc1: (TB, Ip)bf16 @ (Ip, Hp)bf16 -> (TB, Hp) f32 on the MXU
    # (native K-last/K-first orientation, lane-dense padded K dim).
    h = jnp.dot(x_ref[...], w1_ref[...], preferred_element_type=jnp.float32)
    h = jnp.maximum(h + b1_ref[...], 0.0)                  # f32 epilogue

    # fc2: (TB, Hp)bf16 @ (Hp, Cp)bf16 -> (TB, Cp) f32; padded classes carry a
    # -1e30 bias so they vanish from the softmax.
    logits = jnp.dot(h.astype(jnp.bfloat16), w2_ref[...],
                     preferred_element_type=jnp.float32) + b2_ref[...]

    # log_softmax pieces; nll = lse - shifted_logit[target] (logp never built).
    m = jnp.max(logits, axis=1, keepdims=True)
    s = logits - m                                          # (TB, Cp) f32
    lse = jnp.log(jnp.sum(jnp.exp(s), axis=1, keepdims=True))  # EUP exp/log

    tgt = tgt_ref[...]                                      # (TB, 1) int32
    col = lax.broadcasted_iota(jnp.int32, s.shape, 1)       # (TB, Cp)
    gathered = jnp.sum(jnp.where(col == tgt, s, 0.0), axis=1, keepdims=True)
    per_example = lse - gathered                            # (TB, 1)

    # Mask padded tail rows of the final batch tile (true batch size = batch).
    # Rows beyond `batch` are well-defined zero-padded inputs; this mask is a
    # safety net, not a NaN shield.
    row = i * tb + lax.broadcasted_iota(jnp.int32, per_example.shape, 0)
    per_example = jnp.where(row < batch, per_example, 0.0)

    partial_ref[0, 0] = jnp.sum(per_example)


def prepare_params(w1, b1, w2, b2):
    """Pad/transpose/cast the torch-layout params ONCE, outside the step fn.

    In (torch layout): w1 (H, I), b1 (H,), w2 (C, H), b2 (C,).
    Out: w1t (Ip, Hp) bf16, b1p (1, Hp) f32, w2t (Hp, Cp) bf16, b2p (1, Cp) f32
    with Ip/Hp/Cp rounded up to multiples of 128.  Padded input/hidden entries
    are zero (mathematically inert: ReLU(0)=0 contributes nothing); padded
    class logits get a -1e30 bias so softmax/NLL are unchanged.
    """
    H, I = w1.shape
    C, _ = w2.shape
    Ip, Hp, Cp = (_round_up(d, _LANE) for d in (I, H, C))
    f32 = jnp.float32
    w1t = jnp.zeros((Ip, Hp), f32).at[:I, :H].set(w1.astype(f32).T)
    b1p = jnp.zeros((1, Hp), f32).at[0, :H].set(b1.astype(f32))
    w2t = jnp.zeros((Hp, Cp), f32).at[:H, :C].set(w2.astype(f32).T)
    b2p = jnp.full((1, Cp), _NEG, f32).at[0, :C].set(b2.astype(f32))
    return w1t.astype(jnp.bfloat16), b1p, w2t.astype(jnp.bfloat16), b2p


def _vmem_limit_bytes():
    try:
        cap = pltpu.get_tpu_info().vmem_capacity_bytes
    except Exception:
        cap = 64 * 1024 * 1024          # conservative (v7x-sized) fallback
    # Explicit scoped-VMEM request: half of physical capacity.
    # -> 64 MiB on v5e/v6e (128 MiB parts), 32 MiB on v7x (64 MiB part).
    return int(min(cap // 2, 96 * 1024 * 1024))


def _choose_tb(Ip, Hp, Cp, vmem_limit):
    # Resident params, counted double-buffered (safe even if Buffered(1) is
    # unavailable): bf16 weights + f32 biases.
    resident = 2 * (Ip * Hp * 2 + Hp * Cp * 2 + Hp * 4 + Cp * 4)
    # Per-row bytes per grid step: bf16 x tile (double-buffered) + int32 target
    # (double-buffered), plus f32 intermediates h (Hp) and logits/exp (~2*Cp).
    per_row = 2 * (Ip * 2 + 4) + Hp * 4 + 2 * Cp * 4
    budget = vmem_limit - resident - 4 * 1024 * 1024  # compiler-scratch slack
    tb = budget // per_row if budget > 0 else _LANE
    return int(max(_LANE, min(tb, 4096)))


def neuralnet_loss(x, target, w1p, b1p, w2p, b2p, *, tb=None):
    """Mean NLL(log_softmax(fc2(relu(fc1(x))))) — same semantics as the module.

    x: (B, I) float, target: (B,) int class ids; params from prepare_params.
    """
    B, I = x.shape
    Ip, Hp = w1p.shape
    Cp = w2p.shape[1]
    vmem_limit = _vmem_limit_bytes()

    if tb is None:
        tb = _choose_tb(Ip, Hp, Cp, vmem_limit)
    if tb >= B:
        tb = B                           # single full-batch tile (any B allowed)
    elif tb >= 256:
        tb = _align_down(tb, 256)        # keep the MXU M dimension full
    elif tb >= 128:
        tb = _align_down(tb, 128)
    else:
        tb = max(8, _align_down(tb, 8))  # sublane-aligned minimum
    num_blocks = pl.cdiv(B, tb)
    Bp = num_blocks * tb                 # pad B so no block reads OOB rows

    xb = x.astype(jnp.bfloat16)
    if Bp != B or Ip != I:
        xp = jnp.zeros((Bp, Ip), jnp.bfloat16).at[:B, :I].set(xb)
    else:
        xp = xb
    tgt = target.astype(jnp.int32).reshape(B, 1)
    if Bp != B:
        tgt = jnp.zeros((Bp, 1), jnp.int32).at[:B, :].set(tgt)

    kernel = functools.partial(_nll_kernel, batch=B, tb=tb)

    def call(single_buffer_params):
        if single_buffer_params:
            def const_spec(shape):
                return pl.BlockSpec(shape, lambda i: (0, 0),
                                    pipeline_mode=pl.Buffered(1))
        else:
            def const_spec(shape):
                return pl.BlockSpec(shape, lambda i: (0, 0))
        return pl.pallas_call(
            kernel,
            out_shape=jax.ShapeDtypeStruct((num_blocks, 1), jnp.float32),
            grid=(num_blocks,),
            in_specs=[
                pl.BlockSpec((tb, Ip), lambda i: (i, 0)),   # x: streamed per block
                const_spec((Ip, Hp)),                       # w1 (bf16), resident
                const_spec((1, Hp)),                        # b1 (f32)
                const_spec((Hp, Cp)),                       # w2 (bf16), resident
                const_spec((1, Cp)),                        # b2 (f32)
                pl.BlockSpec((tb, 1), lambda i: (i, 0)),    # targets: streamed
            ],
            out_specs=pl.BlockSpec((1, 1), lambda i: (i, 0),
                                   memory_space=pltpu.SMEM),
            compiler_params=pltpu.CompilerParams(
                # Batch blocks are independent.  On v7x, core-parallel
                # semantics could shard them across the two TensorCores; kept
                # "parallel" here for portability across v5e/v6e/v7x.
                dimension_semantics=("parallel",),
                vmem_limit_bytes=vmem_limit,
            ),
        )(xp, w1p, b1p, w2p, b2p, tgt)

    try:
        partials = jax.block_until_ready(call(True))
    except Exception:
        # pipeline_mode=pl.Buffered(1) not accepted by this JAX/Mosaic build;
        # fall back to default double-buffered constant blocks.
        partials = call(False)

    return jnp.sum(partials) / jnp.float32(B)


def _reference_loss(x, w1, b1, w2, b2, target):
    h = jnp.maximum(x @ w1.T + b1, 0.0)
    logits = h @ w2.T + b2
    logp = jax.nn.log_softmax(logits, axis=1)
    return -jnp.mean(logp[jnp.arange(x.shape[0]), target])


if __name__ == "__main__":
    def make_case(key, B, I, H, C):
        ks = jax.random.split(key, 6)
        x = jax.random.normal(ks[0], (B, I), jnp.float32)
        bound1 = 1.0 / (I ** 0.5)
        w1 = jax.random.uniform(ks[1], (H, I), jnp.float32, -bound1, bound1)
        b1 = jax.random.uniform(ks[2], (H,), jnp.float32, -bound1, bound1)
        bound2 = 1.0 / (H ** 0.5)
        w2 = jax.random.uniform(ks[3], (C, H), jnp.float32, -bound2, bound2)
        b2 = jax.random.uniform(ks[4], (C,), jnp.float32, -bound2, bound2)
        tgt = jax.random.randint(ks[5], (B,), 0, C, dtype=jnp.int32)
        return x, w1, b1, w2, b2, tgt

    def check(key, B, I, H, C, tb=None, tol=2e-2):
        x, w1, b1, w2, b2, tgt = make_case(key, B, I, H, C)
        params = prepare_params(w1, b1, w2, b2)
        loss = neuralnet_loss(x, tgt, *params, tb=tb)
        jax.block_until_ready(loss)
        ref = _reference_loss(x, w1, b1, w2, b2, tgt)
        # bf16 matmuls vs f32 reference -> loose tolerance.
        assert jnp.allclose(loss, ref, atol=tol, rtol=tol), (B, I, H, C, loss, ref)

    k1, k2, k3 = jax.random.split(jax.random.PRNGKey(0), 3)

    # Case 1: toy shapes consistent with the module's test (single batch tile).
    check(k1, B=8, I=32, H=32, C=8)
    # Case 2: multi-block grid with a padded final tile (B=20, tb=8 -> Bp=24).
    check(k2, B=20, I=32, H=48, C=10, tb=8)
    # Case 3: 128-row tiles with padded I and B (B=300, tb=128 -> 3 blocks).
    check(k3, B=300, I=40, H=64, C=12, tb=128)

    print("KERNEL_OK")
</pallas_src>

<mosaic_0001>
module attributes {stable_mosaic.version = 11 : i64} {
  func.func @_nll_kernel(%arg0: i32, %arg1: memref<8x128xbf16, #tpu.memory_space<vmem>>, %arg2: memref<128x128xbf16, #tpu.memory_space<vmem>>, %arg3: memref<1x128xf32, #tpu.memory_space<vmem>>, %arg4: memref<128x128xbf16, #tpu.memory_space<vmem>>, %arg5: memref<1x128xf32, #tpu.memory_space<vmem>>, %arg6: memref<8x1xi32, #tpu.memory_space<vmem>>, %arg7: memref<1x1xf32, #tpu.memory_space<smem>>) attributes {dimension_semantics = [#tpu.dimension_semantics<parallel>], iteration_bounds = array<i64: 1>, scalar_prefetch = 0 : i64, scratch_operands = 0 : i64, tpu.core_type = #tpu.core_type<tc>, window_params = [{transform_indices = @transform_0, window_bounds = array<i64: 8, 128>}, {pipeline_mode = #tpu.pipeline_mode<synchronous>, transform_indices = @transform_1, window_bounds = array<i64: 128, 128>}, {pipeline_mode = #tpu.pipeline_mode<synchronous>, transform_indices = @transform_2, window_bounds = array<i64: 1, 128>}, {pipeline_mode = #tpu.pipeline_mode<synchronous>, transform_indices = @transform_3, window_bounds = array<i64: 128, 128>}, {pipeline_mode = #tpu.pipeline_mode<synchronous>, transform_indices = @transform_4, window_bounds = array<i64: 1, 128>}, {transform_indices = @transform_5, window_bounds = array<i64: 8, 1>}, {transform_indices = @transform_6, window_bounds = array<i64: 1, 1>}]} {
    %c0 = arith.constant 0 : index
    %c0_0 = arith.constant 0 : index
    %0 = vector.load %arg1[%c0, %c0_0] : memref<8x128xbf16, #tpu.memory_space<vmem>>, vector<8x128xbf16>
    %c0_1 = arith.constant 0 : index
    %c0_2 = arith.constant 0 : index
    %1 = vector.load %arg2[%c0_1, %c0_2] : memref<128x128xbf16, #tpu.memory_space<vmem>>, vector<128x128xbf16>
    %cst = arith.constant dense<0.000000e+00> : vector<8x128xf32>
    %2 = tpu.matmul %0, %1, %cst {dimension_numbers = #tpu.dot_dimension_numbers<[1], [0], [0], [1], [0, 0, 1, 1], [], []>} : vector<8x128xbf16>, vector<128x128xbf16>, vector<8x128xf32> -> vector<8x128xf32>
    %c0_3 = arith.constant 0 : index
    %c0_4 = arith.constant 0 : index
    %3 = vector.load %arg3[%c0_3, %c0_4] : memref<1x128xf32, #tpu.memory_space<vmem>>, vector<1x128xf32>
    %4 = vector.broadcast %3 : vector<1x128xf32> to vector<8x128xf32>
    %5 = arith.addf %2, %4 : vector<8x128xf32>
    %cst_5 = arith.constant 0.000000e+00 : f32
    %6 = vector.broadcast %cst_5 : f32 to vector<8x128xf32>
    %7 = arith.maximumf %5, %6 : vector<8x128xf32>
    %8 = arith.truncf %7 : vector<8x128xf32> to vector<8x128xbf16>
    %c0_6 = arith.constant 0 : index
    %c0_7 = arith.constant 0 : index
    %9 = vector.load %arg4[%c0_6, %c0_7] : memref<128x128xbf16, #tpu.memory_space<vmem>>, vector<128x128xbf16>
    %cst_8 = arith.constant dense<0.000000e+00> : vector<8x128xf32>
    %10 = tpu.matmul %8, %9, %cst_8 {dimension_numbers = #tpu.dot_dimension_numbers<[1], [0], [0], [1], [0, 0, 1, 1], [], []>} : vector<8x128xbf16>, vector<128x128xbf16>, vector<8x128xf32> -> vector<8x128xf32>
    %c0_9 = arith.constant 0 : index
    %c0_10 = arith.constant 0 : index
    %11 = vector.load %arg5[%c0_9, %c0_10] : memref<1x128xf32, #tpu.memory_space<vmem>>, vector<1x128xf32>
    %12 = vector.broadcast %11 : vector<1x128xf32> to vector<8x128xf32>
    %13 = arith.addf %10, %12 : vector<8x128xf32>
    %cst_11 = arith.constant dense<0xFF800000> : vector<8xf32>
    %14 = vector.multi_reduction <maximumf>, %13, %cst_11 [1] : vector<8x128xf32> to vector<8xf32>
    %15 = vector.shape_cast %14 : vector<8xf32> to vector<8x1xf32>
    %16 = vector.broadcast %15 : vector<8x1xf32> to vector<8x128xf32>
    %17 = arith.subf %13, %16 : vector<8x128xf32>
    %18 = math.exp %17 : vector<8x128xf32>
    %cst_12 = arith.constant dense<0.000000e+00> : vector<8xf32>
    %19 = vector.multi_reduction <add>, %18, %cst_12 [1] : vector<8x128xf32> to vector<8xf32>
    %20 = vector.shape_cast %19 : vector<8xf32> to vector<8x1xf32>
    %21 = math.log %20 : vector<8x1xf32>
    %c0_13 = arith.constant 0 : index
    %c0_14 = arith.constant 0 : index
    %22 = vector.load %arg6[%c0_13, %c0_14] : memref<8x1xi32, #tpu.memory_space<vmem>>, vector<8x1xi32>
    %23 = tpu.iota {dimensions = array<i32: 1>} : vector<8x128xi32>
    %24 = vector.broadcast %22 : vector<8x1xi32> to vector<8x128xi32>
    %25 = arith.cmpi eq, %23, %24 : vector<8x128xi32>
    %cst_15 = arith.constant 0.000000e+00 : f32
    %26 = vector.broadcast %cst_15 : f32 to vector<8x128xf32>
    %27 = arith.select %25, %17, %26 : vector<8x128xi1>, vector<8x128xf32>
    %cst_16 = arith.constant dense<0.000000e+00> : vector<8xf32>
    %28 = vector.multi_reduction <add>, %27, %cst_16 [1] : vector<8x128xf32> to vector<8xf32>
    %29 = vector.shape_cast %28 : vector<8xf32> to vector<8x1xf32>
    %30 = arith.subf %21, %29 : vector<8x1xf32>
    %c8_i32 = arith.constant 8 : i32
    %31 = arith.muli %arg0, %c8_i32 : i32
    %32 = tpu.iota {dimensions = array<i32: 0>} : vector<8x1xi32>
    %33 = vector.broadcast %31 : i32 to vector<8x1xi32>
    %34 = arith.addi %33, %32 : vector<8x1xi32>
    %c8_i32_17 = arith.constant 8 : i32
    %35 = vector.broadcast %c8_i32_17 : i32 to vector<8x1xi32>
    %36 = arith.cmpi slt, %34, %35 : vector<8x1xi32>
    %cst_18 = arith.constant 0.000000e+00 : f32
    %37 = vector.broadcast %cst_18 : f32 to vector<8x1xf32>
    %38 = arith.select %36, %30, %37 : vector<8x1xi1>, vector<8x1xf32>
    %39 = vector.shape_cast %38 : vector<8x1xf32> to vector<1x8x1xf32>
    %cst_19 = arith.constant dense<0.000000e+00> : vector<1xf32>
    %40 = vector.multi_reduction <add>, %39, %cst_19 [1, 2] : vector<1x8x1xf32> to vector<1xf32>
    %41 = vector.shape_cast %40 : vector<1xf32> to vector<1x1x1xf32>
    %42 = vector.extract %41[0, 0, 0] : f32 from vector<1x1x1xf32>
    %c0_20 = arith.constant 0 : index
    %c0_21 = arith.constant 0 : index
    %43 = memref.load %arg7[%c0_20, %c0_21] : memref<1x1xf32, #tpu.memory_space<smem>>
    memref.store %42, %arg7[%c0_20, %c0_21] : memref<1x1xf32, #tpu.memory_space<smem>>
    return
  }
  func.func @transform_0(%arg0: i32) -> (i32, i32) {
    %c0_i32 = arith.constant 0 : i32
    %c0_i32_0 = arith.constant 0 : i32
    return %arg0, %c0_i32 : i32, i32
  }
  func.func @transform_1(%arg0: i32) -> (i32, i32) {
    %c0_i32 = arith.constant 0 : i32
    %c0_i32_0 = arith.constant 0 : i32
    %c0_i32_1 = arith.constant 0 : i32
    return %c0_i32, %c0_i32_0 : i32, i32
  }
  func.func @transform_2(%arg0: i32) -> (i32, i32) {
    %c0_i32 = arith.constant 0 : i32
    %c0_i32_0 = arith.constant 0 : i32
    %c0_i32_1 = arith.constant 0 : i32
    return %c0_i32, %c0_i32_0 : i32, i32
  }
  func.func @transform_3(%arg0: i32) -> (i32, i32) {
    %c0_i32 = arith.constant 0 : i32
    %c0_i32_0 = arith.constant 0 : i32
    %c0_i32_1 = arith.constant 0 : i32
    return %c0_i32, %c0_i32_0 : i32, i32
  }
  func.func @transform_4(%arg0: i32) -> (i32, i32) {
    %c0_i32 = arith.constant 0 : i32
    %c0_i32_0 = arith.constant 0 : i32
    %c0_i32_1 = arith.constant 0 : i32
    return %c0_i32, %c0_i32_0 : i32, i32
  }
  func.func @transform_5(%arg0: i32) -> (i32, i32) {
    %c0_i32 = arith.constant 0 : i32
    %c0_i32_0 = arith.constant 0 : i32
    return %arg0, %c0_i32 : i32, i32
  }
  func.func @transform_6(%arg0: i32) -> (i32, i32) {
    %c0_i32 = arith.constant 0 : i32
    %c0_i32_0 = arith.constant 0 : i32
    return %arg0, %c0_i32 : i32, i32
  }
}

module attributes {stable_mosaic.version = 11 : i64} {
  func.func @_nll_kernel(%arg0: i32, %arg1: memref<8x128xbf16, #tpu.memory_space<vmem>>, %arg2: memref<128x128xbf16, #tpu.memory_space<vmem>>, %arg3: memref<1x128xf32, #tpu.memory_space<vmem>>, %arg4: memref<128x128xbf16, #tpu.memory_space<vmem>>, %arg5: memref<1x128xf32, #tpu.memory_space<vmem>>, %arg6: memref<8x1xi32, #tpu.memory_space<vmem>>, %arg7: memref<1x1xf32, #tpu.memory_space<smem>>) attributes {dimension_semantics = [#tpu.dimension_semantics<parallel>], iteration_bounds = array<i64: 1>, scalar_prefetch = 0 : i64, scratch_operands = 0 : i64, tpu.core_type = #tpu.core_type<tc>, window_params = [{transform_indices = @transform_0, window_bounds = array<i64: 8, 128>}, {pipeline_mode = #tpu.pipeline_mode<synchronous>, transform_indices = @transform_1, window_bounds = array<i64: 128, 128>}, {pipeline_mode = #tpu.pipeline_mode<synchronous>, transform_indices = @transform_2, window_bounds = array<i64: 1, 128>}, {pipeline_mode = #tpu.pipeline_mode<synchronous>, transform_indices = @transform_3, window_bounds = array<i64: 128, 128>}, {pipeline_mode = #tpu.pipeline_mode<synchronous>, transform_indices = @transform_4, window_bounds = array<i64: 1, 128>}, {transform_indices = @transform_5, window_bounds = array<i64: 8, 1>}, {transform_indices = @transform_6, window_bounds = array<i64: 1, 1>}]} {
    %c0 = arith.constant 0 : index
    %c0_0 = arith.constant 0 : index
    %0 = vector.load %arg1[%c0, %c0_0] : memref<8x128xbf16, #tpu.memory_space<vmem>>, vector<8x128xbf16>
    %c0_1 = arith.constant 0 : index
    %c0_2 = arith.constant 0 : index
    %1 = vector.load %arg2[%c0_1, %c0_2] : memref<128x128xbf16, #tpu.memory_space<vmem>>, vector<128x128xbf16>
    %cst = arith.constant dense<0.000000e+00> : vector<8x128xf32>
    %2 = tpu.matmul %0, %1, %cst {dimension_numbers = #tpu.dot_dimension_numbers<[1], [0], [0], [1], [0, 0, 1, 1], [], []>} : vector<8x128xbf16>, vector<128x128xbf16>, vector<8x128xf32> -> vector<8x128xf32>
    %c0_3 = arith.constant 0 : index
    %c0_4 = arith.constant 0 : index
    %3 = vector.load %arg3[%c0_3, %c0_4] : memref<1x128xf32, #tpu.memory_space<vmem>>, vector<1x128xf32>
    %4 = vector.broadcast %3 : vector<1x128xf32> to vector<8x128xf32>
    %5 = arith.addf %2, %4 : vector<8x128xf32>
    %cst_5 = arith.constant 0.000000e+00 : f32
    %6 = vector.broadcast %cst_5 : f32 to vector<8x128xf32>
    %7 = arith.maximumf %5, %6 : vector<8x128xf32>
    %8 = arith.truncf %7 : vector<8x128xf32> to vector<8x128xbf16>
    %c0_6 = arith.constant 0 : index
    %c0_7 = arith.constant 0 : index
    %9 = vector.load %arg4[%c0_6, %c0_7] : memref<128x128xbf16, #tpu.memory_space<vmem>>, vector<128x128xbf16>
    %cst_8 = arith.constant dense<0.000000e+00> : vector<8x128xf32>
    %10 = tpu.matmul %8, %9, %cst_8 {dimension_numbers = #tpu.dot_dimension_numbers<[1], [0], [0], [1], [0, 0, 1, 1], [], []>} : vector<8x128xbf16>, vector<128x128xbf16>, vector<8x128xf32> -> vector<8x128xf32>
    %c0_9 = arith.constant 0 : index
    %c0_10 = arith.constant 0 : index
    %11 = vector.load %arg5[%c0_9, %c0_10] : memref<1x128xf32, #tpu.memory_space<vmem>>, vector<1x128xf32>
    %12 = vector.broadcast %11 : vector<1x128xf32> to vector<8x128xf32>
    %13 = arith.addf %10, %12 : vector<8x128xf32>
    %cst_11 = arith.constant dense<0xFF800000> : vector<8xf32>
    %14 = vector.multi_reduction <maximumf>, %13, %cst_11 [1] : vector<8x128xf32> to vector<8xf32>
    %15 = vector.shape_cast %14 : vector<8xf32> to vector<8x1xf32>
    %16 = vector.broadcast %15 : vector<8x1xf32> to vector<8x128xf32>
    %17 = arith.subf %13, %16 : vector<8x128xf32>
    %18 = math.exp %17 : vector<8x128xf32>
    %cst_12 = arith.constant dense<0.000000e+00> : vector<8xf32>
    %19 = vector.multi_reduction <add>, %18, %cst_12 [1] : vector<8x128xf32> to vector<8xf32>
    %20 = vector.shape_cast %19 : vector<8xf32> to vector<8x1xf32>
    %21 = math.log %20 : vector<8x1xf32>
    %c0_13 = arith.constant 0 : index
    %c0_14 = arith.constant 0 : index
    %22 = vector.load %arg6[%c0_13, %c0_14] : memref<8x1xi32, #tpu.memory_space<vmem>>, vector<8x1xi32>
    %23 = tpu.iota {dimensions = array<i32: 1>} : vector<8x128xi32>
    %24 = vector.broadcast %22 : vector<8x1xi32> to vector<8x128xi32>
    %25 = arith.cmpi eq, %23, %24 : vector<8x128xi32>
    %cst_15 = arith.constant 0.000000e+00 : f32
    %26 = vector.broadcast %cst_15 : f32 to vector<8x128xf32>
    %27 = arith.select %25, %17, %26 : vector<8x128xi1>, vector<8x128xf32>
    %cst_16 = arith.constant dense<0.000000e+00> : vector<8xf32>
    %28 = vector.multi_reduction <add>, %27, %cst_16 [1] : vector<8x128xf32> to vector<8xf32>
    %29 = vector.shape_cast %28 : vector<8xf32> to vector<8x1xf32>
    %30 = arith.subf %21, %29 : vector<8x1xf32>
    %c8_i32 = arith.constant 8 : i32
    %31 = arith.muli %arg0, %c8_i32 : i32
    %32 = tpu.iota {dimensions = array<i32: 0>} : vector<8x1xi32>
    %33 = vector.broadcast %31 : i32 to vector<8x1xi32>
    %34 = arith.addi %33, %32 : vector<8x1xi32>
    %c8_i32_17 = arith.constant 8 : i32
    %35 = vector.broadcast %c8_i32_17 : i32 to vector<8x1xi32>
    %36 = arith.cmpi slt, %34, %35 : vector<8x1xi32>
    %cst_18 = arith.constant 0.000000e+00 : f32
    %37 = vector.broadcast %cst_18 : f32 to vector<8x1xf32>
    %38 = arith.select %36, %30, %37 : vector<8x1xi1>, vector<8x1xf32>
    %39 = vector.shape_cast %38 : vector<8x1xf32> to vector<1x8x1xf32>
    %cst_19 = arith.constant dense<0.000000e+00> : vector<1xf32>
    %40 = vector.multi_reduction <add>, %39, %cst_19 [1, 2] : vector<1x8x1xf32> to vector<1xf32>
    %41 = vector.shape_cast %40 : vector<1xf32> to vector<1x1x1xf32>
    %42 = vector.extract %41[0, 0, 0] : f32 from vector<1x1x1xf32>
    %c0_20 = arith.constant 0 : index
    %c0_21 = arith.constant 0 : index
    %43 = memref.load %arg7[%c0_20, %c0_21] : memref<1x1xf32, #tpu.memory_space<smem>>
    memref.store %42, %arg7[%c0_20, %c0_21] : memref<1x1xf32, #tpu.memory_space<smem>>
    return
  }
  func.func @transform_0(%arg0: i32) -> (i32, i32) {
    %c0_i32 = arith.constant 0 : i32
    %c0_i32_0 = arith.constant 0 : i32
    return %arg0, %c0_i32 : i32, i32
  }
  func.func @transform_1(%arg0: i32) -> (i32, i32) {
    %c0_i32 = arith.constant 0 : i32
    %c0_i32_0 = arith.constant 0 : i32
    %c0_i32_1 = arith.constant 0 : i32
    return %c0_i32, %c0_i32_0 : i32, i32
  }
  func.func @transform_2(%arg0: i32) -> (i32, i32) {
    %c0_i32 = arith.constant 0 : i32
    %c0_i32_0 = arith.constant 0 : i32
    %c0_i32_1 = arith.constant 0 : i32
    return %c0_i32, %c0_i32_0 : i32, i32
  }
  func.func @transform_3(%arg0: i32) -> (i32, i32) {
    %c0_i32 = arith.constant 0 : i32
    %c0_i32_0 = arith.constant 0 : i32
    %c0_i32_1 = arith.constant 0 : i32
    return %c0_i32, %c0_i32_0 : i32, i32
  }
  func.func @transform_4(%arg0: i32) -> (i32, i32) {
    %c0_i32 = arith.constant 0 : i32
    %c0_i32_0 = arith.constant 0 : i32
    %c0_i32_1 = arith.constant 0 : i32
    return %c0_i32, %c0_i32_0 : i32, i32
  }
  func.func @transform_5(%arg0: i32) -> (i32, i32) {
    %c0_i32 = arith.constant 0 : i32
    %c0_i32_0 = arith.constant 0 : i32
    return %arg0, %c0_i32 : i32, i32
  }
  func.func @transform_6(%arg0: i32) -> (i32, i32) {
    %c0_i32 = arith.constant 0 : i32
    %c0_i32_0 = arith.constant 0 : i32
    return %arg0, %c0_i32 : i32, i32
  }
}

</mosaic_0001>

<llo_original>
// kernel: tpu_custom_call.1
$region0: #{tpu_custom_call.1}
  #allocation0 [shape = 'u32[]', space=smem, size = 0x4, offset = 0x4, fixed_abs, tag = 'smem constant byte address 0x4 - core index']
  #allocation1 [shape = 'u32[144,128]{1,0:T(1,128)}', space=vmem, size = 0x12000, scoped, tag = 'internal scratch']
  %s0 = inlined_call_operand.vmem [shape: bf16[8,128], index: 0, kind: input, shape index: {}]
  %s1 = inlined_call_operand.hbm [shape: bf16[128,128], index: 1, kind: input, shape index: {}]
  %s2 = inlined_call_operand.vmem [shape: f32[1,128], index: 2, kind: input, shape index: {}]
  %s3 = inlined_call_operand.hbm [shape: bf16[128,128], index: 3, kind: input, shape index: {}]
  %s4 = inlined_call_operand.vmem [shape: f32[1,128], index: 4, kind: input, shape index: {}]
  %s5 = inlined_call_operand.vmem [shape: s32[8,1], index: 5, kind: input, shape index: {}]
  %s6 = inlined_call_operand.hbm [shape: f32[1,1], index: 6, kind: output, shape index: {}]
  %s7 = sld [smem:[#allocation0]]
  $region42: #{tpu_custom_call.1} parent=0
    _
  %s9 = ssub.s32 1, %s7
  %s10 = scalar_select 0, %s9, %s7
  $region1: #{tpu_custom_call.1} parent=0
    #allocation2 [shape = 'u8[32768]{0}', space=vmem, size = 0x8000, scoped, tag = 'input window, operand 1, single buffered']
    #allocation3 [shape = 's32[1]{0}', space=sflag, size = 0x4, scoped, tag = 'scoped memory for tpu_custom_call.1']
    #allocation4 [shape = 's32[1]{0}', space=sflag, size = 0x4, scoped, tag = 'scoped memory for tpu_custom_call.1']
    #allocation5 [shape = 'u8[32768]{0}', space=vmem, size = 0x8000, scoped, tag = 'input window, operand 3, single buffered']
    #allocation6 [shape = 's32[1]{0}', space=sflag, size = 0x4, scoped, tag = 'scoped memory for tpu_custom_call.1']
    #allocation7 [shape = 'u8[512]{0}', space=smem, size = 0x200, scoped, tag = 'output window, operand 0, single buffered']
    %11 = vsyncpa [#allocation3], 0
    %12 = vsyncpa [#allocation6], 0
    %13 = vsyncpa [#allocation4], 0
    // Predicated region
    $region2: #{tpu_custom_call.1} parent=1 // pred_check
      _
    $region3: #{tpu_custom_call.1} parent=1 // pred_check_branch
      %15 = sbr.rel (0) target = $region5
    $region4: #{tpu_custom_call.1} parent=1 // pred_region
      _
    $region5: #{tpu_custom_call.1} parent=1 // pred_fallthru
      _
    // Predicated region
    $region6: #{tpu_custom_call.1} parent=1 // pred_check
      _
    $region7: #{tpu_custom_call.1} parent=1 // pred_check_branch
      %17 = sbr.rel (0) target = $region9
    $region8: #{tpu_custom_call.1} parent=1 // pred_region
      %s19 = ssub.s32 1024, 1024
      %20 = vsyncadd [#allocation3], %s19
      %s21 = sshll.u32 [#allocation2], 4
      %s22 = int_to_ptr.vmem [resolvable:$true] %s21
      %27 = dma.hbm_to_vmem [thread:$0]  %s1, 1024, %s22, [#allocation3], 64, 64, 4
    $region9: #{tpu_custom_call.1} parent=1 // pred_fallthru
      _
    // Predicated region
    $region10: #{tpu_custom_call.1} parent=1 // pred_check
      _
    $region11: #{tpu_custom_call.1} parent=1 // pred_check_branch
      %29 = sbr.rel (0) target = $region13
    $region12: #{tpu_custom_call.1} parent=1 // pred_region
      _
    $region13: #{tpu_custom_call.1} parent=1 // pred_fallthru
      _
    // Predicated region
    $region14: #{tpu_custom_call.1} parent=1 // pred_check
      _
    $region15: #{tpu_custom_call.1} parent=1 // pred_check_branch
      %31 = sbr.rel (0) target = $region17
    $region16: #{tpu_custom_call.1} parent=1 // pred_region
      %s33 = ssub.s32 1024, 1024
      %34 = vsyncadd [#allocation6], %s33
      %s35 = sshll.u32 [#allocation5], 4
      %s36 = int_to_ptr.vmem [resolvable:$true] %s35
      %41 = dma.hbm_to_vmem [thread:$0]  %s3, 1024, %s36, [#allocation6], 64, 64, 4
    $region17: #{tpu_custom_call.1} parent=1 // pred_fallthru
      _
    // Predicated region
    $region18: #{tpu_custom_call.1} parent=1 // pred_check
      _
    $region19: #{tpu_custom_call.1} parent=1 // pred_check_branch
      %43 = sbr.rel (0) target = $region21
    $region20: #{tpu_custom_call.1} parent=1 // pred_region
      _
    $region21: #{tpu_custom_call.1} parent=1 // pred_fallthru
      _
    // Predicated region
    $region22: #{tpu_custom_call.1} parent=1 // pred_check
      _
    $region23: #{tpu_custom_call.1} parent=1 // pred_check_branch
      %45 = sbr.rel (0) target = $region25
    $region24: #{tpu_custom_call.1} parent=1 // pred_region
      _
    $region25: #{tpu_custom_call.1} parent=1 // pred_fallthru
      _
    // Predicated region
    $region26: #{tpu_custom_call.1} parent=1 // pred_check
      _
    $region27: #{tpu_custom_call.1} parent=1 // pred_check_branch
      %47 = sbr.rel (0) target = $region29
    $region28: #{tpu_custom_call.1} parent=1 // pred_region
      %48 = dma.done [#allocation3], 1024
    $region29: #{tpu_custom_call.1} parent=1 // pred_fallthru
      _
    // Predicated region
    $region30: #{tpu_custom_call.1} parent=1 // pred_check
      _
    $region31: #{tpu_custom_call.1} parent=1 // pred_check_branch
      %50 = sbr.rel (0) target = $region33
    $region32: #{tpu_custom_call.1} parent=1 // pred_region
      %51 = dma.done [#allocation6], 1024
    $region33: #{tpu_custom_call.1} parent=1 // pred_fallthru
      _
    %v53 = vld [vmem:[%s0] sm:$0xf]
    %v54 = vld [vmem:[#allocation2] sm:$0xf]
    %v55 = vld [vmem:[#allocation2 + $0x4] sm:$0xf]
    %v56 = vld [vmem:[#allocation2 + $0x8] sm:$0xf]
    %v57 = vld [vmem:[#allocation2 + $0xc] sm:$0xf]
    %v58 = vld [vmem:[#allocation2 + $0x10] sm:$0xf]
    %v59 = vld [vmem:[#allocation2 + $0x14] sm:$0xf]
    %v60 = vld [vmem:[#allocation2 + $0x18] sm:$0xf]
    %v61 = vld [vmem:[#allocation2 + $0x1c] sm:$0xf]
    %v62 = vld [vmem:[#allocation2 + $0x20] sm:$0xf]
    %v63 = vld [vmem:[#allocation2 + $0x24] sm:$0xf]
    %v64 = vld [vmem:[#allocation2 + $0x28] sm:$0xf]
    %v65 = vld [vmem:[#allocation2 + $0x2c] sm:$0xf]
    %v66 = vld [vmem:[#allocation2 + $0x30] sm:$0xf]
    %v67 = vld [vmem:[#allocation2 + $0x34] sm:$0xf]
    %v68 = vld [vmem:[#allocation2 + $0x38] sm:$0xf]
    %v69 = vld [vmem:[#allocation2 + $0x3c] sm:$0xf]
    %v70 = vld [vmem:[%s2] sm:$0x1]
    %v72 = vlaneseq
    %v73 = vshrl.u32 %v72, 7
    %v74 = vsub.s32 0, %v73
    %v75 = vrot.slane %v70, %v74
    %v93 = vunpack.c.l.b16 %v54
    %v94 = vunpack.c.l.b16 %v55
    %v95 = vunpack.c.l.b16 %v56
    %v96 = vunpack.c.l.b16 %v57
    %v97 = vunpack.c.l.b16 %v58
    %v98 = vunpack.c.l.b16 %v59
    %v99 = vunpack.c.l.b16 %v60
    %v100 = vunpack.c.l.b16 %v61
    %v101 = vunpack.c.l.b16 %v62
    %v102 = vunpack.c.l.b16 %v63
    %v103 = vunpack.c.l.b16 %v64
    %v104 = vunpack.c.l.b16 %v65
    %v105 = vunpack.c.l.b16 %v66
    %v106 = vunpack.c.l.b16 %v67
    %v107 = vunpack.c.l.b16 %v68
    %v108 = vunpack.c.l.b16 %v69
    %v109 = vpack.c.b16 %v94, %v93
    %v110 = vpack.c.b16 %v96, %v95
    %v111 = vpack.c.b16 %v98, %v97
    %v112 = vpack.c.b16 %v100, %v99
    %v113 = vpack.c.b16 %v102, %v101
    %v114 = vpack.c.b16 %v104, %v103
    %v115 = vpack.c.b16 %v106, %v105
    %v116 = vpack.c.b16 %v108, %v107
    %125 = vmatprep.subr.bf16.mxu0 0
    %126 = vmatpush1.bf16.msra.mxu0 %v116
    %127 = vmatprep.subr.bf16.mxu0 0
    %128 = vmatpush1.bf16.msra.mxu0 %v115
    %129 = vmatprep.subr.bf16.mxu0 0
    %130 = vmatpush1.bf16.msra.mxu0 %v114
    %131 = vmatprep.subr.bf16.mxu0 0
    %132 = vmatpush1.bf16.msra.mxu0 %v113
    %133 = vmatprep.subr.bf16.mxu0 0
    %134 = vmatpush1.bf16.msra.mxu0 %v112
    %135 = vmatprep.subr.bf16.mxu0 0
    %136 = vmatpush1.bf16.msra.mxu0 %v111
    %137 = vmatprep.subr.bf16.mxu0 0
    %138 = vmatpush1.bf16.msra.mxu0 %v110
    %139 = vmatprep.subr.bf16.mxu0 0
    %140 = vmatpush1.bf16.msra.mxu0 %v109
    %141 = vmatprep.subr.bf16.mxu0 0
    %142 = vmatpush2.bf16.msra.mxu0 0
    %143 = vmatprep.subr.bf16.mxu0 0
    %144 = vmatpush2.bf16.msra.mxu0 0
    %145 = vmatprep.subr.bf16.mxu0 0
    %146 = vmatpush2.bf16.msra.mxu0 0
    %147 = vmatprep.subr.bf16.mxu0 0
    %148 = vmatpush2.bf16.msra.mxu0 0
    %149 = vmatprep.subr.bf16.mxu0 0
    %150 = vmatpush2.bf16.msra.mxu0 0
    %151 = vmatprep.subr.bf16.mxu0 0
    %152 = vmatpush2.bf16.msra.mxu0 0
    %153 = vmatprep.subr.bf16.mxu0 0
    %154 = vmatpush2.bf16.msra.mxu0 0
    %155 = vmatprep.subr.bf16.mxu0 0
    %156 = vmatpush2.bf16.msra.mxu0 0
    %157 = vmatprep.mubr.bf16.mxu0 0
    %158 = vmatmul.mubr.bf16.gmra.mxu0 %v53
    %v159 = vpop.f32.mrf.mxu0
    %v160 = vadd.f32 %v75, %v159
    %v161 = vpop.f32.mrf.mxu0
    %v162 = vpop.f32.mrf.mxu0
    %v163 = vpop.f32.mrf.mxu0
    %164 = vdwg.mxu0
    %v165 = vmax.f32 %v160, 0.0
    %v166 = vpack.c.bf16 %v165, %v165
    %v167 = vld [vmem:[#allocation5] sm:$0xf]
    %v168 = vld [vmem:[#allocation5 + $0x4] sm:$0xf]
    %v169 = vld [vmem:[#allocation5 + $0x8] sm:$0xf]
    %v170 = vld [vmem:[#allocation5 + $0xc] sm:$0xf]
    %v171 = vld [vmem:[#allocation5 + $0x10] sm:$0xf]
    %v172 = vld [vmem:[#allocation5 + $0x14] sm:$0xf]
    %v173 = vld [vmem:[#allocation5 + $0x18] sm:$0xf]
    %v174 = vld [vmem:[#allocation5 + $0x1c] sm:$0xf]
    %v175 = vld [vmem:[#allocation5 + $0x20] sm:$0xf]
    %v176 = vld [vmem:[#allocation5 + $0x24] sm:$0xf]
    %v177 = vld [vmem:[#allocation5 + $0x28] sm:$0xf]
    %v178 = vld [vmem:[#allocation5 + $0x2c] sm:$0xf]
    %v179 = vld [vmem:[#allocation5 + $0x30] sm:$0xf]
    %v180 = vld [vmem:[#allocation5 + $0x34] sm:$0xf]
    %v181 = vld [vmem:[#allocation5 + $0x38] sm:$0xf]
    %v182 = vld [vmem:[#allocation5 + $0x3c] sm:$0xf]
    %v183 = vld [vmem:[%s4] sm:$0x1]
    %v185 = vlaneseq
    %v186 = vshrl.u32 %v185, 7
    %v187 = vsub.s32 0, %v186
    %v188 = vrot.slane %v183, %v187
    %v206 = vunpack.c.l.b16 %v167
    %v207 = vunpack.c.l.b16 %v168
    %v208 = vunpack.c.l.b16 %v169
    %v209 = vunpack.c.l.b16 %v170
    %v210 = vunpack.c.l.b16 %v171
    %v211 = vunpack.c.l.b16 %v172
    %v212 = vunpack.c.l.b16 %v173
    %v213 = vunpack.c.l.b16 %v174
    %v214 = vunpack.c.l.b16 %v175
    %v215 = vunpack.c.l.b16 %v176
    %v216 = vunpack.c.l.b16 %v177
    %v217 = vunpack.c.l.b16 %v178
    %v218 = vunpack.c.l.b16 %v179
    %v219 = vunpack.c.l.b16 %v180
    %v220 = vunpack.c.l.b16 %v181
    %v221 = vunpack.c.l.b16 %v182
    %v222 = vpack.c.b16 %v207, %v206
    %v223 = vpack.c.b16 %v209, %v208
    %v224 = vpack.c.b16 %v211, %v210
    %v225 = vpack.c.b16 %v213, %v212
    %v226 = vpack.c.b16 %v215, %v214
    %v227 = vpack.c.b16 %v217, %v216
    %v228 = vpack.c.b16 %v219, %v218
    %v229 = vpack.c.b16 %v221, %v220
    %238 = vmatprep.subr.bf16.mxu0 0
    %239 = vmatpush1.bf16.msra.mxu0 %v229
    %240 = vmatprep.subr.bf16.mxu0 0
    %241 = vmatpush1.bf16.msra.mxu0 %v228
    %242 = vmatprep.subr.bf16.mxu0 0
    %243 = vmatpush1.bf16.msra.mxu0 %v227
    %244 = vmatprep.subr.bf16.mxu0 0
    %245 = vmatpush1.bf16.msra.mxu0 %v226
    %246 = vmatprep.subr.bf16.mxu0 0
    %247 = vmatpush1.bf16.msra.mxu0 %v225
    %248 = vmatprep.subr.bf16.mxu0 0
    %249 = vmatpush1.bf16.msra.mxu0 %v224
    %250 = vmatprep.subr.bf16.mxu0 0
    %251 = vmatpush1.bf16.msra.mxu0 %v223
    %252 = vmatprep.subr.bf16.mxu0 0
    %253 = vmatpush1.bf16.msra.mxu0 %v222
    %254 = vmatprep.subr.bf16.mxu0 0
    %255 = vmatpush2.bf16.msra.mxu0 0
    %256 = vmatprep.subr.bf16.mxu0 0
    %257 = vmatpush2.bf16.msra.mxu0 0
    %258 = vmatprep.subr.bf16.mxu0 0
    %259 = vmatpush2.bf16.msra.mxu0 0
    %260 = vmatprep.subr.bf16.mxu0 0
    %261 = vmatpush2.bf16.msra.mxu0 0
    %262 = vmatprep.subr.bf16.mxu0 0
    %263 = vmatpush2.bf16.msra.mxu0 0
    %264 = vmatprep.subr.bf16.mxu0 0
    %265 = vmatpush2.bf16.msra.mxu0 0
    %266 = vmatprep.subr.bf16.mxu0 0
    %267 = vmatpush2.bf16.msra.mxu0 0
    %268 = vmatprep.subr.bf16.mxu0 0
    %269 = vmatpush2.bf16.msra.mxu0 0
    %270 = vmatprep.mubr.bf16.mxu0 0
    %271 = vmatmul.mubr.bf16.gmra.mxu0 %v166
    %v272 = vpop.f32.mrf.mxu0
    %v273 = vadd.f32 %v188, %v272
    %v274 = vpop.f32.mrf.mxu0
    %v275 = vpop.f32.mrf.mxu0
    %v276 = vpop.f32.mrf.mxu0
    %277 = vdwg.mxu0
    %278 = vmax.xlane.f32.xlu0 %v273
    %v279 = vpop.xlane.xlu0 %278
    %v280 = vsub.f32 %v273, %v279
    %v281 = vmul.f32 %v280, 1.442695
    %v282 = vpow.pop %v281
    %283 = vadd.xlane.f32.xlu0 %v282
    %v284 = vpop.xlane.xlu0 %283
    %v285 = vlog2.pop %v284
    %v286 = vmul.f32 %v285, 0.6931472
    %v287 = vld [vmem:[%s5] sm:$0xff]
    %v288 = vlaneseq
    %v289 = vand.u32 %v288, 127
    %290 = vset.pattern.permute.xlu0 0
    %291 = vperm.xlu0 %290, %v287
    %v292 = vpop.permute.xlu0 %291
    %vm293 = vcmp.eq.s32.totalorder %v289, %v292
    %v294 = vsel %vm293, %v280, 0.0
    %295 = vadd.xlane.f32.xlu0 %v294
    %v296 = vpop.xlane.xlu0 %295
    %v297 = vsub.f32 %v286, %v296
    %s298 = smul.u32 0, 8
    %v299 = vlaneseq
    %v300 = vshrl.u32 %v299, 7
    %v301 = vstv %s298
    %v302 = vadd.s32 %v301, %v300
    %vm303 = vcmp.lt.s32.totalorder %v302, 8
    %v304 = vsel %vm303, %v297, 0.0
    %vm305 = vcmask 7168
    %v306 = vsel %vm305, %v304, 0.0
    %307 = vadd.xlane.f32.xlu0 %v306
    %v308 = vpop.xlane.xlu0 %307
    %v309 = vrot.slane %v308, 4
    %v310 = vadd.f32 %v308, %v309
    %v311 = vrot.slane %v310, 2
    %v312 = vadd.f32 %v310, %v311
    %v313 = vrot.slane %v312, 1
    %v314 = vadd.f32 %v312, %v313
    %s315 = vtos %v314
    %s316 = scalar_lea.smem [#allocation7], 0
    %317 = sst [smem:[%s316]] %s315
    // Predicated region
    $region34: #{tpu_custom_call.1} parent=1 // pred_check
      _
    $region35: #{tpu_custom_call.1} parent=1 // pred_check_branch
      %319 = sbr.rel (0) target = $region37
    $region36: #{tpu_custom_call.1} parent=1 // pred_region
      %s321 = ssub.s32 16, 16
      %322 = vsyncadd [#allocation4], %s321
      %325 = dma.smem_to_hbm [#allocation7], 16, %s6, [#allocation4]
    $region37: #{tpu_custom_call.1} parent=1 // pred_fallthru
      _
    // Predicated region
    $region38: #{tpu_custom_call.1} parent=1 // pred_check
      _
    $region39: #{tpu_custom_call.1} parent=1 // pred_check_branch
      %327 = sbr.rel (0) target = $region41
    $region40: #{tpu_custom_call.1} parent=1 // pred_region
      %328 = dma.done [#allocation4], 16
    $region41: #{tpu_custom_call.1} parent=1 // pred_fallthru
      _
    %329 = sfence
    %330 = vsyncpa [#allocation3], 1
    %331 = vsyncpa [#allocation6], 1
    %332 = vsyncpa [#allocation4], 1

// kernel: tpu_custom_call.1
$region0: #{tpu_custom_call.1}
  #allocation0 [shape = 'u32[]', space=smem, size = 0x4, offset = 0x4, fixed_abs, tag = 'smem constant byte address 0x4 - core index']
  #allocation1 [shape = 'u32[144,128]{1,0:T(1,128)}', space=vmem, size = 0x12000, scoped, tag = 'internal scratch']
  %s0 = inlined_call_operand.vmem [shape: bf16[8,128], index: 0, kind: input, shape index: {}]
  %s1 = inlined_call_operand.hbm [shape: bf16[128,128], index: 1, kind: input, shape index: {}]
  %s2 = inlined_call_operand.vmem [shape: f32[1,128], index: 2, kind: input, shape index: {}]
  %s3 = inlined_call_operand.hbm [shape: bf16[128,128], index: 3, kind: input, shape index: {}]
  %s4 = inlined_call_operand.vmem [shape: f32[1,128], index: 4, kind: input, shape index: {}]
  %s5 = inlined_call_operand.vmem [shape: s32[8,1], index: 5, kind: input, shape index: {}]
  %s6 = inlined_call_operand.hbm [shape: f32[1,1], index: 6, kind: output, shape index: {}]
  %s7 = sld [smem:[#allocation0]]
  $region42: #{tpu_custom_call.1} parent=0
    _
  %s9 = ssub.s32 1, %s7
  %s10 = scalar_select 0, %s9, %s7
  $region1: #{tpu_custom_call.1} parent=0
    #allocation2 [shape = 'u8[32768]{0}', space=vmem, size = 0x8000, scoped, tag = 'input window, operand 1, single buffered']
    #allocation3 [shape = 's32[1]{0}', space=sflag, size = 0x4, scoped, tag = 'scoped memory for tpu_custom_call.1']
    #allocation4 [shape = 's32[1]{0}', space=sflag, size = 0x4, scoped, tag = 'scoped memory for tpu_custom_call.1']
    #allocation5 [shape = 'u8[32768]{0}', space=vmem, size = 0x8000, scoped, tag = 'input window, operand 3, single buffered']
    #allocation6 [shape = 's32[1]{0}', space=sflag, size = 0x4, scoped, tag = 'scoped memory for tpu_custom_call.1']
    #allocation7 [shape = 'u8[512]{0}', space=smem, size = 0x200, scoped, tag = 'output window, operand 0, single buffered']
    %11 = vsyncpa [#allocation3], 0
    %12 = vsyncpa [#allocation6], 0
    %13 = vsyncpa [#allocation4], 0
    // Predicated region
    $region2: #{tpu_custom_call.1} parent=1 // pred_check
      _
    $region3: #{tpu_custom_call.1} parent=1 // pred_check_branch
      %15 = sbr.rel (0) target = $region5
    $region4: #{tpu_custom_call.1} parent=1 // pred_region
      _
    $region5: #{tpu_custom_call.1} parent=1 // pred_fallthru
      _
    // Predicated region
    $region6: #{tpu_custom_call.1} parent=1 // pred_check
      _
    $region7: #{tpu_custom_call.1} parent=1 // pred_check_branch
      %17 = sbr.rel (0) target = $region9
    $region8: #{tpu_custom_call.1} parent=1 // pred_region
      %s19 = ssub.s32 1024, 1024
      %20 = vsyncadd [#allocation3], %s19
      %s21 = sshll.u32 [#allocation2], 4
      %s22 = int_to_ptr.vmem [resolvable:$true] %s21
      %27 = dma.hbm_to_vmem [thread:$0]  %s1, 1024, %s22, [#allocation3], 64, 64, 4
    $region9: #{tpu_custom_call.1} parent=1 // pred_fallthru
      _
    // Predicated region
    $region10: #{tpu_custom_call.1} parent=1 // pred_check
      _
    $region11: #{tpu_custom_call.1} parent=1 // pred_check_branch
      %29 = sbr.rel (0) target = $region13
    $region12: #{tpu_custom_call.1} parent=1 // pred_region
      _
    $region13: #{tpu_custom_call.1} parent=1 // pred_fallthru
      _
    // Predicated region
    $region14: #{tpu_custom_call.1} parent=1 // pred_check
      _
    $region15: #{tpu_custom_call.1} parent=1 // pred_check_branch
      %31 = sbr.rel (0) target = $region17
    $region16: #{tpu_custom_call.1} parent=1 // pred_region
      %s33 = ssub.s32 1024, 1024
      %34 = vsyncadd [#allocation6], %s33
      %s35 = sshll.u32 [#allocation5], 4
      %s36 = int_to_ptr.vmem [resolvable:$true] %s35
      %41 = dma.hbm_to_vmem [thread:$0]  %s3, 1024, %s36, [#allocation6], 64, 64, 4
    $region17: #{tpu_custom_call.1} parent=1 // pred_fallthru
      _
    // Predicated region
    $region18: #{tpu_custom_call.1} parent=1 // pred_check
      _
    $region19: #{tpu_custom_call.1} parent=1 // pred_check_branch
      %43 = sbr.rel (0) target = $region21
    $region20: #{tpu_custom_call.1} parent=1 // pred_region
      _
    $region21: #{tpu_custom_call.1} parent=1 // pred_fallthru
      _
    // Predicated region
    $region22: #{tpu_custom_call.1} parent=1 // pred_check
      _
    $region23: #{tpu_custom_call.1} parent=1 // pred_check_branch
      %45 = sbr.rel (0) target = $region25
    $region24: #{tpu_custom_call.1} parent=1 // pred_region
      _
    $region25: #{tpu_custom_call.1} parent=1 // pred_fallthru
      _
    // Predicated region
    $region26: #{tpu_custom_call.1} parent=1 // pred_check
      _
    $region27: #{tpu_custom_call.1} parent=1 // pred_check_branch
      %47 = sbr.rel (0) target = $region29
    $region28: #{tpu_custom_call.1} parent=1 // pred_region
      %48 = dma.done [#allocation3], 1024
    $region29: #{tpu_custom_call.1} parent=1 // pred_fallthru
      _
    // Predicated region
    $region30: #{tpu_custom_call.1} parent=1 // pred_check
      _
    $region31: #{tpu_custom_call.1} parent=1 // pred_check_branch
      %50 = sbr.rel (0) target = $region33
    $region32: #{tpu_custom_call.1} parent=1 // pred_region
      %51 = dma.done [#allocation6], 1024
    $region33: #{tpu_custom_call.1} parent=1 // pred_fallthru
      _
    %v53 = vld [vmem:[%s0] sm:$0xf]
    %v54 = vld [vmem:[#allocation2] sm:$0xf]
    %v55 = vld [vmem:[#allocation2 + $0x4] sm:$0xf]
    %v56 = vld [vmem:[#allocation2 + $0x8] sm:$0xf]
    %v57 = vld [vmem:[#allocation2 + $0xc] sm:$0xf]
    %v58 = vld [vmem:[#allocation2 + $0x10] sm:$0xf]
    %v59 = vld [vmem:[#allocation2 + $0x14] sm:$0xf]
    %v60 = vld [vmem:[#allocation2 + $0x18] sm:$0xf]
    %v61 = vld [vmem:[#allocation2 + $0x1c] sm:$0xf]
    %v62 = vld [vmem:[#allocation2 + $0x20] sm:$0xf]
    %v63 = vld [vmem:[#allocation2 + $0x24] sm:$0xf]
    %v64 = vld [vmem:[#allocation2 + $0x28] sm:$0xf]
    %v65 = vld [vmem:[#allocation2 + $0x2c] sm:$0xf]
    %v66 = vld [vmem:[#allocation2 + $0x30] sm:$0xf]
    %v67 = vld [vmem:[#allocation2 + $0x34] sm:$0xf]
    %v68 = vld [vmem:[#allocation2 + $0x38] sm:$0xf]
    %v69 = vld [vmem:[#allocation2 + $0x3c] sm:$0xf]
    %v70 = vld [vmem:[%s2] sm:$0x1]
    %v72 = vlaneseq
    %v73 = vshrl.u32 %v72, 7
    %v74 = vsub.s32 0, %v73
    %v75 = vrot.slane %v70, %v74
    %v93 = vunpack.c.l.b16 %v54
    %v94 = vunpack.c.l.b16 %v55
    %v95 = vunpack.c.l.b16 %v56
    %v96 = vunpack.c.l.b16 %v57
    %v97 = vunpack.c.l.b16 %v58
    %v98 = vunpack.c.l.b16 %v59
    %v99 = vunpack.c.l.b16 %v60
    %v100 = vunpack.c.l.b16 %v61
    %v101 = vunpack.c.l.b16 %v62
    %v102 = vunpack.c.l.b16 %v63
    %v103 = vunpack.c.l.b16 %v64
    %v104 = vunpack.c.l.b16 %v65
    %v105 = vunpack.c.l.b16 %v66
    %v106 = vunpack.c.l.b16 %v67
    %v107 = vunpack.c.l.b16 %v68
    %v108 = vunpack.c.l.b16 %v69
    %v109 = vpack.c.b16 %v94, %v93
    %v110 = vpack.c.b16 %v96, %v95
    %v111 = vpack.c.b16 %v98, %v97
    %v112 = vpack.c.b16 %v100, %v99
    %v113 = vpack.c.b16 %v102, %v101
    %v114 = vpack.c.b16 %v104, %v103
    %v115 = vpack.c.b16 %v106, %v105
    %v116 = vpack.c.b16 %v108, %v107
    %125 = vmatprep.subr.bf16.mxu0 0
    %126 = vmatpush1.bf16.msra.mxu0 %v116
    %127 = vmatprep.subr.bf16.mxu0 0
    %128 = vmatpush1.bf16.msra.mxu0 %v115
    %129 = vmatprep.subr.bf16.mxu0 0
    %130 = vmatpush1.bf16.msra.mxu0 %v114
    %131 = vmatprep.subr.bf16.mxu0 0
    %132 = vmatpush1.bf16.msra.mxu0 %v113
    %133 = vmatprep.subr.bf16.mxu0 0
    %134 = vmatpush1.bf16.msra.mxu0 %v112
    %135 = vmatprep.subr.bf16.mxu0 0
    %136 = vmatpush1.bf16.msra.mxu0 %v111
    %137 = vmatprep.subr.bf16.mxu0 0
    %138 = vmatpush1.bf16.msra.mxu0 %v110
    %139 = vmatprep.subr.bf16.mxu0 0
    %140 = vmatpush1.bf16.msra.mxu0 %v109
    %141 = vmatprep.subr.bf16.mxu0 0
    %142 = vmatpush2.bf16.msra.mxu0 0
    %143 = vmatprep.subr.bf16.mxu0 0
    %144 = vmatpush2.bf16.msra.mxu0 0
    %145 = vmatprep.subr.bf16.mxu0 0
    %146 = vmatpush2.bf16.msra.mxu0 0
    %147 = vmatprep.subr.bf16.mxu0 0
    %148 = vmatpush2.bf16.msra.mxu0 0
    %149 = vmatprep.subr.bf16.mxu0 0
    %150 = vmatpush2.bf16.msra.mxu0 0
    %151 = vmatprep.subr.bf16.mxu0 0
    %152 = vmatpush2.bf16.msra.mxu0 0
    %153 = vmatprep.subr.bf16.mxu0 0
    %154 = vmatpush2.bf16.msra.mxu0 0
    %155 = vmatprep.subr.bf16.mxu0 0
    %156 = vmatpush2.bf16.msra.mxu0 0
    %157 = vmatprep.mubr.bf16.mxu0 0
    %158 = vmatmul.mubr.bf16.gmra.mxu0 %v53
    %v159 = vpop.f32.mrf.mxu0
    %v160 = vadd.f32 %v75, %v159
    %v161 = vpop.f32.mrf.mxu0
    %v162 = vpop.f32.mrf.mxu0
    %v163 = vpop.f32.mrf.mxu0
    %164 = vdwg.mxu0
    %v165 = vmax.f32 %v160, 0.0
    %v166 = vpack.c.bf16 %v165, %v165
    %v167 = vld [vmem:[#allocation5] sm:$0xf]
    %v168 = vld [vmem:[#allocation5 + $0x4] sm:$0xf]
    %v169 = vld [vmem:[#allocation5 + $0x8] sm:$0xf]
    %v170 = vld [vmem:[#allocation5 + $0xc] sm:$0xf]
    %v171 = vld [vmem:[#allocation5 + $0x10] sm:$0xf]
    %v172 = vld [vmem:[#allocation5 + $0x14] sm:$0xf]
    %v173 = vld [vmem:[#allocation5 + $0x18] sm:$0xf]
    %v174 = vld [vmem:[#allocation5 + $0x1c] sm:$0xf]
    %v175 = vld [vmem:[#allocation5 + $0x20] sm:$0xf]
    %v176 = vld [vmem:[#allocation5 + $0x24] sm:$0xf]
    %v177 = vld [vmem:[#allocation5 + $0x28] sm:$0xf]
    %v178 = vld [vmem:[#allocation5 + $0x2c] sm:$0xf]
    %v179 = vld [vmem:[#allocation5 + $0x30] sm:$0xf]
    %v180 = vld [vmem:[#allocation5 + $0x34] sm:$0xf]
    %v181 = vld [vmem:[#allocation5 + $0x38] sm:$0xf]
    %v182 = vld [vmem:[#allocation5 + $0x3c] sm:$0xf]
    %v183 = vld [vmem:[%s4] sm:$0x1]
    %v185 = vlaneseq
    %v186 = vshrl.u32 %v185, 7
    %v187 = vsub.s32 0, %v186
    %v188 = vrot.slane %v183, %v187
    %v206 = vunpack.c.l.b16 %v167
    %v207 = vunpack.c.l.b16 %v168
    %v208 = vunpack.c.l.b16 %v169
    %v209 = vunpack.c.l.b16 %v170
    %v210 = vunpack.c.l.b16 %v171
    %v211 = vunpack.c.l.b16 %v172
    %v212 = vunpack.c.l.b16 %v173
    %v213 = vunpack.c.l.b16 %v174
    %v214 = vunpack.c.l.b16 %v175
    %v215 = vunpack.c.l.b16 %v176
    %v216 = vunpack.c.l.b16 %v177
    %v217 = vunpack.c.l.b16 %v178
    %v218 = vunpack.c.l.b16 %v179
    %v219 = vunpack.c.l.b16 %v180
    %v220 = vunpack.c.l.b16 %v181
    %v221 = vunpack.c.l.b16 %v182
    %v222 = vpack.c.b16 %v207, %v206
    %v223 = vpack.c.b16 %v209, %v208
    %v224 = vpack.c.b16 %v211, %v210
    %v225 = vpack.c.b16 %v213, %v212
    %v226 = vpack.c.b16 %v215, %v214
    %v227 = vpack.c.b16 %v217, %v216
    %v228 = vpack.c.b16 %v219, %v218
    %v229 = vpack.c.b16 %v221, %v220
    %238 = vmatprep.subr.bf16.mxu0 0
    %239 = vmatpush1.bf16.msra.mxu0 %v229
    %240 = vmatprep.subr.bf16.mxu0 0
    %241 = vmatpush1.bf16.msra.mxu0 %v228
    %242 = vmatprep.subr.bf16.mxu0 0
    %243 = vmatpush1.bf16.msra.mxu0 %v227
    %244 = vmatprep.subr.bf16.mxu0 0
    %245 = vmatpush1.bf16.msra.mxu0 %v226
    %246 = vmatprep.subr.bf16.mxu0 0
    %247 = vmatpush1.bf16.msra.mxu0 %v225
    %248 = vmatprep.subr.bf16.mxu0 0
    %249 = vmatpush1.bf16.msra.mxu0 %v224
    %250 = vmatprep.subr.bf16.mxu0 0
    %251 = vmatpush1.bf16.msra.mxu0 %v223
    %252 = vmatprep.subr.bf16.mxu0 0
    %253 = vmatpush1.bf16.msra.mxu0 %v222
    %254 = vmatprep.subr.bf16.mxu0 0
    %255 = vmatpush2.bf16.msra.mxu0 0
    %256 = vmatprep.subr.bf16.mxu0 0
    %257 = vmatpush2.bf16.msra.mxu0 0
    %258 = vmatprep.subr.bf16.mxu0 0
    %259 = vmatpush2.bf16.msra.mxu0 0
    %260 = vmatprep.subr.bf16.mxu0 0
    %261 = vmatpush2.bf16.msra.mxu0 0
    %262 = vmatprep.subr.bf16.mxu0 0
    %263 = vmatpush2.bf16.msra.mxu0 0
    %264 = vmatprep.subr.bf16.mxu0 0
    %265 = vmatpush2.bf16.msra.mxu0 0
    %266 = vmatprep.subr.bf16.mxu0 0
    %267 = vmatpush2.bf16.msra.mxu0 0
    %268 = vmatprep.subr.bf16.mxu0 0
    %269 = vmatpush2.bf16.msra.mxu0 0
    %270 = vmatprep.mubr.bf16.mxu0 0
    %271 = vmatmul.mubr.bf16.gmra.mxu0 %v166
    %v272 = vpop.f32.mrf.mxu0
    %v273 = vadd.f32 %v188, %v272
    %v274 = vpop.f32.mrf.mxu0
    %v275 = vpop.f32.mrf.mxu0
    %v276 = vpop.f32.mrf.mxu0
    %277 = vdwg.mxu0
    %278 = vmax.xlane.f32.xlu0 %v273
    %v279 = vpop.xlane.xlu0 %278
    %v280 = vsub.f32 %v273, %v279
    %v281 = vmul.f32 %v280, 1.442695
    %v282 = vpow.pop %v281
    %283 = vadd.xlane.f32.xlu0 %v282
    %v284 = vpop.xlane.xlu0 %283
    %v285 = vlog2.pop %v284
    %v286 = vmul.f32 %v285, 0.6931472
    %v287 = vld [vmem:[%s5] sm:$0xff]
    %v288 = vlaneseq
    %v289 = vand.u32 %v288, 127
    %290 = vset.pattern.permute.xlu0 0
    %291 = vperm.xlu0 %290, %v287
    %v292 = vpop.permute.xlu0 %291
    %vm293 = vcmp.eq.s32.totalorder %v289, %v292
    %v294 = vsel %vm293, %v280, 0.0
    %295 = vadd.xlane.f32.xlu0 %v294
    %v296 = vpop.xlane.xlu0 %295
    %v297 = vsub.f32 %v286, %v296
    %s298 = smul.u32 0, 8
    %v299 = vlaneseq
    %v300 = vshrl.u32 %v299, 7
    %v301 = vstv %s298
    %v302 = vadd.s32 %v301, %v300
    %vm303 = vcmp.lt.s32.totalorder %v302, 8
    %v304 = vsel %vm303, %v297, 0.0
    %vm305 = vcmask 7168
    %v306 = vsel %vm305, %v304, 0.0
    %307 = vadd.xlane.f32.xlu0 %v306
    %v308 = vpop.xlane.xlu0 %307
    %v309 = vrot.slane %v308, 4
    %v310 = vadd.f32 %v308, %v309
    %v311 = vrot.slane %v310, 2
    %v312 = vadd.f32 %v310, %v311
    %v313 = vrot.slane %v312, 1
    %v314 = vadd.f32 %v312, %v313
    %s315 = vtos %v314
    %s316 = scalar_lea.smem [#allocation7], 0
    %317 = sst [smem:[%s316]] %s315
    // Predicated region
    $region34: #{tpu_custom_call.1} parent=1 // pred_check
      _
    $region35: #{tpu_custom_call.1} parent=1 // pred_check_branch
      %319 = sbr.rel (0) target = $region37
    $region36: #{tpu_custom_call.1} parent=1 // pred_region
      %s321 = ssub.s32 16, 16
      %322 = vsyncadd [#allocation4], %s321
      %325 = dma.smem_to_hbm [#allocation7], 16, %s6, [#allocation4]
    $region37: #{tpu_custom_call.1} parent=1 // pred_fallthru
      _
    // Predicated region
    $region38: #{tpu_custom_call.1} parent=1 // pred_check
      _
    $region39: #{tpu_custom_call.1} parent=1 // pred_check_branch
      %327 = sbr.rel (0) target = $region41
    $region40: #{tpu_custom_call.1} parent=1 // pred_region
      %328 = dma.done [#allocation4], 16
    $region41: #{tpu_custom_call.1} parent=1 // pred_fallthru
      _
    %329 = sfence
    %330 = vsyncpa [#allocation3], 1
    %331 = vsyncpa [#allocation6], 1
    %332 = vsyncpa [#allocation4], 1

</llo_original>
